<compile_context>
chip_gen: v7x
topology: tpu7x:2x2x1
jax: 0.10.0
libtpu: 0.0.40
codegen_flags: <defaults>
</compile_context>

<pallas_src>
import math
import functools

import jax
import jax.numpy as jnp
from jax.experimental import pallas as pl
from jax.experimental.pallas import tpu as pltpu


# ---------------------------------------------------------------------------
# Parameter / buffer construction (glue, plain JAX -- mirrors __init__)
# ---------------------------------------------------------------------------
def make_pos_embedding(emb_size: int, maxlen: int = 5000, dtype=jnp.float32):
    den = jnp.exp(
        -jnp.arange(0, emb_size, 2, dtype=jnp.float32) * math.log(10000.0) / emb_size
    )
    pos = jnp.arange(0, maxlen, dtype=jnp.float32).reshape(maxlen, 1)
    pe = jnp.zeros((maxlen, emb_size), dtype=jnp.float32)
    pe = pe.at[:, 0::2].set(jnp.sin(pos * den))
    pe = pe.at[:, 1::2].set(jnp.cos(pos * den))
    return pe[:, None, :].astype(dtype)  # (maxlen, 1, emb_size)


# ---------------------------------------------------------------------------
# Pallas kernels -- all operate on 2-D (block_seq, b_tile*E) blocks
# ---------------------------------------------------------------------------
def _pe_add_kernel(x_ref, pe_ref, o_ref, *, b_tile):
    # eval-mode forward: out = x + pe  (dropout is identity)
    pe_rep = jnp.tile(pe_ref[...], (1, b_tile))          # (bs, b_tile*E)
    o_ref[...] = (x_ref[...] + pe_rep).astype(o_ref.dtype)


def _pe_add_dropout_hw_kernel(seed_ref, x_ref, pe_ref, o_ref, *, p, b_tile):
    # training-mode forward using the hardware PRNG (inverted dropout).
    i = pl.program_id(0)
    j = pl.program_id(1)
    # one seed per block -> independent streams per (seq-tile, batch-tile)
    pltpu.prng_seed(seed_ref[0] + i * pl.num_programs(1) + j)

    y = x_ref[...] + jnp.tile(pe_ref[...], (1, b_tile))
    bits = pltpu.prng_random_bits(y.shape)
    if bits.dtype != jnp.uint32:
        bits = pltpu.bitcast(bits, jnp.uint32)
    # top 24 bits as a non-negative int32 -> signed compare (safe on Mosaic)
    r24 = (bits >> jnp.uint32(8)).astype(jnp.int32)
    thr = min(max(int(round(p * (1 << 24))), 0), 1 << 24)  # drop prob = p
    keep = r24 >= jnp.int32(thr)

    scale = jnp.asarray(1.0 / (1.0 - p), dtype=y.dtype)
    o_ref[...] = jnp.where(keep, y * scale, jnp.zeros_like(y)).astype(o_ref.dtype)


def _pe_add_dropout_hash_kernel(seed_ref, x_ref, pe_ref, o_ref, *, p, b_tile):
    # Fallback for non-TPU backends / interpret mode (no HW PRNG lowering).
    # Flattened iota + per-block salt folded into the seed on the scalar side.
    i = pl.program_id(0)
    j = pl.program_id(1)
    y = x_ref[...] + jnp.tile(pe_ref[...], (1, b_tile))
    shape = y.shape

    flat = (jax.lax.broadcasted_iota(jnp.int32, shape, 0) * shape[1]
            + jax.lax.broadcasted_iota(jnp.int32, shape, 1))
    salt = (seed_ref[0].astype(jnp.uint32)
            + (i * pl.num_programs(1) + j).astype(jnp.uint32)
            * jnp.uint32(0x632BE59B))

    h = flat.astype(jnp.uint32) * jnp.uint32(0x9E3779B1) + salt
    h = h ^ (h >> jnp.uint32(16))
    h = h * jnp.uint32(0x7FEB352D)
    h = h ^ (h >> jnp.uint32(15))
    h = h * jnp.uint32(0x846CA68B)
    h = h ^ (h >> jnp.uint32(16))

    r24 = (h >> jnp.uint32(8)).astype(jnp.int32)
    thr = min(max(int(round(p * (1 << 24))), 0), 1 << 24)
    keep = r24 >= jnp.int32(thr)

    scale = jnp.asarray(1.0 / (1.0 - p), dtype=y.dtype)
    o_ref[...] = jnp.where(keep, y * scale, jnp.zeros_like(y)).astype(o_ref.dtype)


# ---------------------------------------------------------------------------
# Generation-aware budgets & tiling helpers
# ---------------------------------------------------------------------------
def _vmem_budgets():
    cap = None
    try:
        info = pltpu.get_tpu_info()
        cap = getattr(info, "vmem_capacity_bytes", None)
    except Exception:
        cap = None
    if not cap:
        cap = 64 * 1024 * 1024           # conservative default (v7x per-TC)
    cap = int(cap)
    # v5e/v6e (128 MiB) -> 64 MiB limit, ~10 MiB blocks; v7x (64 MiB) -> 32 MiB, ~5 MiB.
    vmem_limit = max(16 * 1024 * 1024, min(cap // 2, 64 * 1024 * 1024))
    target_block = max(1 << 20, vmem_limit // 6)
    return cap, vmem_limit, target_block


def _pick_batch_tile(B, E, itemsize, target_block_bytes):
    """Lane tile in whole-batch units so the PE row tiles trivially in-kernel."""
    if B * E * itemsize <= target_block_bytes:
        return B
    bt_max = max(1, target_block_bytes // (E * itemsize))
    if bt_max >= B:
        return B
    # largest divisor of B that fits the budget and keeps lane blocks 128-aligned
    for bt in range(min(bt_max, B), 0, -1):
        if B % bt == 0 and (bt * E) % 128 == 0:
            return bt
    return B


# ---------------------------------------------------------------------------
# Wrapper
# ---------------------------------------------------------------------------
def positional_encoding_forward(
    token_embedding,          # (S, B, E)
    pos_embedding,            # (maxlen, 1, E)
    *,
    dropout_p: float = 0.1,
    training: bool = False,
    seed: int = 0,
    block_seq: int | None = None,        # None -> auto-size
    target_block_bytes: int | None = None,
):
    S, B, E = token_embedding.shape
    dtype = token_embedding.dtype
    itemsize = jnp.dtype(dtype).itemsize
    BE = B * E

    cap, vmem_limit, auto_target = _vmem_budgets()
    if target_block_bytes is None:
        target_block_bytes = auto_target

    # ---- lane tiling (batch folded into lanes; tile in whole-batch units) --
    b_tile = _pick_batch_tile(B, E, itemsize, target_block_bytes)
    n_btiles = B // b_tile
    row_block_bytes = b_tile * E * itemsize

    # ---- sequence tiling ----------------------------------------------------
    if block_seq is None:
        rows = max(8, target_block_bytes // max(1, row_block_bytes))
        total_bytes = S * BE * itemsize
        # keep >= ~4 grid steps for pipelining / v7x 2-TC sharding (big inputs only)
        if total_bytes > (4 << 20) and (S // 4) >= 8 and n_btiles < 4:
            rows = min(rows, ((S // 4) // 8) * 8)
        block_seq = rows
    block_seq = int(min(int(block_seq), S))
    if block_seq < S:
        block_seq = max(8, (block_seq // 8) * 8)   # sublane-aligned tiles

    # raise VMEM limit if the double-buffered working set needs it
    block_bytes = block_seq * row_block_bytes
    pe_block_bytes = block_seq * E * itemsize
    needed = 4 * block_bytes + 2 * pe_block_bytes + (1 << 20)
    vmem_limit = max(vmem_limit, min(needed, cap))

    grid = (pl.cdiv(S, block_seq), n_btiles)

    # free, contiguous reshapes: (S,B,E) <-> (S, B*E)
    x2d = token_embedding.reshape(S, BE)
    pe2d = pos_embedding[:S, 0, :].astype(dtype)   # (S, E): the `[:x.size(0)]` slice

    x_spec = pl.BlockSpec((block_seq, b_tile * E), lambda i, j, *_: (i, j))
    pe_spec = pl.BlockSpec((block_seq, E), lambda i, j, *_: (i, 0))
    o_spec = pl.BlockSpec((block_seq, b_tile * E), lambda i, j, *_: (i, j))
    out_shape = jax.ShapeDtypeStruct((S, BE), dtype)

    compiler_params = pltpu.CompilerParams(
        dimension_semantics=("parallel", "parallel"),   # no cross-iteration carry
        vmem_limit_bytes=int(vmem_limit),
    )

    if training and dropout_p > 0.0:
        if dropout_p >= 1.0:
            return jnp.zeros_like(token_embedding)
        on_tpu = jax.default_backend() == "tpu"
        body = _pe_add_dropout_hw_kernel if on_tpu else _pe_add_dropout_hash_kernel
        kernel = functools.partial(body, p=float(dropout_p), b_tile=b_tile)
        grid_spec = pltpu.PrefetchScalarGridSpec(
            num_scalar_prefetch=1,
            grid=grid,
            in_specs=[x_spec, pe_spec],
            out_specs=o_spec,
        )
        seed_arr = jnp.array([seed], dtype=jnp.int32)
        out2d = pl.pallas_call(
            kernel, out_shape=out_shape, grid_spec=grid_spec,
            compiler_params=compiler_params,
        )(seed_arr, x2d, pe2d)
    else:
        kernel = functools.partial(_pe_add_kernel, b_tile=b_tile)
        grid_spec = pltpu.PrefetchScalarGridSpec(
            num_scalar_prefetch=0,
            grid=grid,
            in_specs=[x_spec, pe_spec],
            out_specs=o_spec,
        )
        out2d = pl.pallas_call(
            kernel, out_shape=out_shape, grid_spec=grid_spec,
            compiler_params=compiler_params,
        )(x2d, pe2d)

    return out2d.reshape(S, B, E)


# ---------------------------------------------------------------------------
# Demo / self-check
# ---------------------------------------------------------------------------
if __name__ == "__main__":
    S, B, E = 16, 4, 128        # seq, batch, emb_size (B*E lane-dense: 512 lanes)
    MAXLEN = 64
    DROPOUT_P = 0.1

    key = jax.random.PRNGKey(0)
    x = jax.random.normal(key, (S, B, E), dtype=jnp.float32)
    pos_emb = make_pos_embedding(E, maxlen=MAXLEN)

    # Eval mode (dropout = identity): check against plain-JAX reference.
    out_eval = positional_encoding_forward(
        x, pos_emb, dropout_p=DROPOUT_P, training=False
    )
    jax.block_until_ready(out_eval)
    ref = x + pos_emb[:S]
    assert out_eval.shape == (S, B, E)
    assert jnp.allclose(out_eval, ref, atol=1e-6), "eval-mode mismatch"

    # Training mode: exercise the fused dropout kernel (deterministic seed).
    out_train = positional_encoding_forward(
        x, pos_emb, dropout_p=DROPOUT_P, training=True, seed=1234
    )
    jax.block_until_ready(out_train)
    assert out_train.shape == (S, B, E)
    # Every surviving element must equal ref / (1 - p); dropped ones are 0.
    surv = out_train != 0.0
    assert jnp.allclose(
        jnp.where(surv, out_train, 0.0),
        jnp.where(surv, ref / (1.0 - DROPOUT_P), 0.0),
        atol=1e-5,
    ), "training-mode dropout scaling mismatch"
    # Dropout must actually drop roughly a fraction p of elements.
    drop_frac = float(1.0 - jnp.mean(surv.astype(jnp.float32)))
    assert 0.02 < drop_frac < 0.30, f"unexpected drop fraction {drop_frac}"

    print("KERNEL_OK")
</pallas_src>

<mosaic_0001>
module attributes {stable_mosaic.version = 11 : i64} {
  func.func @_pe_add_kernel(%arg0: i32, %arg1: i32, %arg2: memref<16x512xf32, #tpu.memory_space<vmem>>, %arg3: memref<16x128xf32, #tpu.memory_space<vmem>>, %arg4: memref<16x512xf32, #tpu.memory_space<vmem>>) attributes {dimension_semantics = [#tpu.dimension_semantics<parallel>, #tpu.dimension_semantics<parallel>], iteration_bounds = array<i64: 1, 1>, scalar_prefetch = 0 : i64, scratch_operands = 0 : i64, tpu.core_type = #tpu.core_type<tc>, window_params = [{transform_indices = @transform_0, window_bounds = array<i64: 16, 512>}, {transform_indices = @transform_1, window_bounds = array<i64: 16, 128>}, {transform_indices = @transform_2, window_bounds = array<i64: 16, 512>}]} {
    %c0 = arith.constant 0 : index
    %c0_0 = arith.constant 0 : index
    %0 = vector.load %arg3[%c0, %c0_0] : memref<16x128xf32, #tpu.memory_space<vmem>>, vector<16x128xf32>
    %1 = tpu.concatenate %0, %0, %0, %0 in 1 : vector<16x128xf32>, vector<16x128xf32>, vector<16x128xf32>, vector<16x128xf32> -> vector<16x512xf32>
    %c0_1 = arith.constant 0 : index
    %c0_2 = arith.constant 0 : index
    %2 = vector.load %arg2[%c0_1, %c0_2] : memref<16x512xf32, #tpu.memory_space<vmem>>, vector<16x512xf32>
    %3 = arith.addf %2, %1 : vector<16x512xf32>
    %c0_3 = arith.constant 0 : index
    %c0_4 = arith.constant 0 : index
    %4 = vector.load %arg4[%c0_3, %c0_4] : memref<16x512xf32, #tpu.memory_space<vmem>>, vector<16x512xf32>
    tpu.vector_store %arg4[%c0_3, %c0_4], %3 {strides = array<i32>} : memref<16x512xf32, #tpu.memory_space<vmem>>, vector<16x512xf32>,
    return
  }
  func.func @transform_0(%arg0: i32, %arg1: i32) -> (i32, i32) {
    %c0_i32 = arith.constant 0 : i32
    return %arg0, %arg1 : i32, i32
  }
  func.func @transform_1(%arg0: i32, %arg1: i32) -> (i32, i32) {
    %c0_i32 = arith.constant 0 : i32
    %c0_i32_0 = arith.constant 0 : i32
    return %arg0, %c0_i32 : i32, i32
  }
  func.func @transform_2(%arg0: i32, %arg1: i32) -> (i32, i32) {
    %c0_i32 = arith.constant 0 : i32
    return %arg0, %arg1 : i32, i32
  }
}

</mosaic_0001>

<llo_original>
// kernel: tpu_custom_call.1
$region0: #{tpu_custom_call.1}
  #allocation0 [shape = 'u32[]', space=smem, size = 0x4, offset = 0x4, fixed_abs, tag = 'smem constant byte address 0x4 - core index']
  #allocation1 [shape = 'u32[144,128]{1,0:T(1,128)}', space=vmem, size = 0x12000, scoped, tag = 'internal scratch']
  %s0 = inlined_call_operand.hbm [shape: f32[16,512], index: 0, kind: input, shape index: {}]
  %s1 = inlined_call_operand.hbm [shape: f32[16,128], index: 1, kind: input, shape index: {}]
  %s2 = inlined_call_operand.hbm [shape: f32[16,512], index: 2, kind: output, shape index: {}]
  %s3 = sld [smem:[#allocation0]]
  $region26: #{tpu_custom_call.1} parent=0
    _
  %s5 = ssub.s32 1, %s3
  %s6 = scalar_select 0, %s5, %s3
  $region1: #{tpu_custom_call.1} parent=0
    #allocation2 [shape = 'u8[32768]{0}', space=vmem, size = 0x8000, scoped, tag = 'input window, operand 0, single buffered']
    #allocation3 [shape = 's32[1]{0}', space=sflag, size = 0x4, scoped, tag = 'scoped memory for tpu_custom_call.1']
    #allocation4 [shape = 's32[1]{0}', space=sflag, size = 0x4, scoped, tag = 'scoped memory for tpu_custom_call.1']
    #allocation5 [shape = 'u8[8192]{0}', space=vmem, size = 0x2000, scoped, tag = 'input window, operand 1, single buffered']
    #allocation6 [shape = 's32[1]{0}', space=sflag, size = 0x4, scoped, tag = 'scoped memory for tpu_custom_call.1']
    #allocation7 [shape = 'u8[32768]{0}', space=vmem, size = 0x8000, scoped, tag = 'output window, operand 0, single buffered']
    %7 = vsyncpa [#allocation3], 0
    %8 = vsyncpa [#allocation6], 0
    %9 = vsyncpa [#allocation4], 0
    // Predicated region
    $region2: #{tpu_custom_call.1} parent=1 // pred_check
      _
    $region3: #{tpu_custom_call.1} parent=1 // pred_check_branch
      %11 = sbr.rel (0) target = $region5
    $region4: #{tpu_custom_call.1} parent=1 // pred_region
      %s13 = ssub.s32 1024, 1024
      %14 = vsyncadd [#allocation3], %s13
      %s15 = sshll.u32 [#allocation2], 4
      %s16 = int_to_ptr.vmem [resolvable:$true] %s15
      %21 = dma.hbm_to_vmem [thread:$0]  %s0, 1024, %s16, [#allocation3], 512, 512, 32
    $region5: #{tpu_custom_call.1} parent=1 // pred_fallthru
      _
    // Predicated region
    $region6: #{tpu_custom_call.1} parent=1 // pred_check
      _
    $region7: #{tpu_custom_call.1} parent=1 // pred_check_branch
      %23 = sbr.rel (0) target = $region9
    $region8: #{tpu_custom_call.1} parent=1 // pred_region
      %s25 = ssub.s32 256, 256
      %26 = vsyncadd [#allocation6], %s25
      %s27 = sshll.u32 [#allocation5], 4
      %s28 = int_to_ptr.vmem [resolvable:$true] %s27
      %33 = dma.hbm_to_vmem [thread:$0]  %s1, 256, %s28, [#allocation6], 128, 128, 8
    $region9: #{tpu_custom_call.1} parent=1 // pred_fallthru
      _
    // Predicated region
    $region10: #{tpu_custom_call.1} parent=1 // pred_check
      _
    $region11: #{tpu_custom_call.1} parent=1 // pred_check_branch
      %35 = sbr.rel (0) target = $region13
    $region12: #{tpu_custom_call.1} parent=1 // pred_region
      %36 = dma.done [#allocation3], 1024
    $region13: #{tpu_custom_call.1} parent=1 // pred_fallthru
      _
    // Predicated region
    $region14: #{tpu_custom_call.1} parent=1 // pred_check
      _
    $region15: #{tpu_custom_call.1} parent=1 // pred_check_branch
      %38 = sbr.rel (0) target = $region17
    $region16: #{tpu_custom_call.1} parent=1 // pred_region
      %39 = dma.done [#allocation6], 256
    $region17: #{tpu_custom_call.1} parent=1 // pred_fallthru
      _
    %v40 = vld [vmem:[#allocation5] sm:$0xff]
    %v41 = vld [vmem:[#allocation5 + $0x8] sm:$0xff]
    %v42 = vld [vmem:[#allocation2] sm:$0xff]
    %v43 = vld [vmem:[#allocation2 + $0x8] sm:$0xff]
    %v44 = vld [vmem:[#allocation2 + $0x10] sm:$0xff]
    %v45 = vld [vmem:[#allocation2 + $0x18] sm:$0xff]
    %v46 = vld [vmem:[#allocation2 + $0x20] sm:$0xff]
    %v47 = vld [vmem:[#allocation2 + $0x28] sm:$0xff]
    %v48 = vld [vmem:[#allocation2 + $0x30] sm:$0xff]
    %v49 = vld [vmem:[#allocation2 + $0x38] sm:$0xff]
    %v50 = vadd.f32 %v42, %v40
    %v51 = vadd.f32 %v43, %v40
    %v52 = vadd.f32 %v44, %v40
    %v53 = vadd.f32 %v45, %v40
    %v54 = vadd.f32 %v46, %v41
    %v55 = vadd.f32 %v47, %v41
    %v56 = vadd.f32 %v48, %v41
    %v57 = vadd.f32 %v49, %v41
    %58 = vst [vmem:[#allocation7] sm:$0xff] %v50
    %59 = vst [vmem:[#allocation7 + $0x8] sm:$0xff] %v51
    %60 = vst [vmem:[#allocation7 + $0x10] sm:$0xff] %v52
    %61 = vst [vmem:[#allocation7 + $0x18] sm:$0xff] %v53
    %62 = vst [vmem:[#allocation7 + $0x20] sm:$0xff] %v54
    %63 = vst [vmem:[#allocation7 + $0x28] sm:$0xff] %v55
    %64 = vst [vmem:[#allocation7 + $0x30] sm:$0xff] %v56
    %65 = vst [vmem:[#allocation7 + $0x38] sm:$0xff] %v57
    // Predicated region
    $region18: #{tpu_custom_call.1} parent=1 // pred_check
      _
    $region19: #{tpu_custom_call.1} parent=1 // pred_check_branch
      %67 = sbr.rel (0) target = $region21
    $region20: #{tpu_custom_call.1} parent=1 // pred_region
      %s69 = ssub.s32 1024, 1024
      %70 = vsyncadd [#allocation4], %s69
      %s71 = sshll.u32 [#allocation7], 4
      %s72 = int_to_ptr.vmem [resolvable:$true] %s71
      %77 = dma.vmem_to_hbm [thread:$0]  %s72, 1024, %s2, [#allocation4], 512, 512, 32
    $region21: #{tpu_custom_call.1} parent=1 // pred_fallthru
      _
    // Predicated region
    $region22: #{tpu_custom_call.1} parent=1 // pred_check
      _
    $region23: #{tpu_custom_call.1} parent=1 // pred_check_branch
      %79 = sbr.rel (0) target = $region25
    $region24: #{tpu_custom_call.1} parent=1 // pred_region
      %80 = dma.done [#allocation4], 1024
    $region25: #{tpu_custom_call.1} parent=1 // pred_fallthru
      _
    %81 = vsyncpa [#allocation3], 1
    %82 = vsyncpa [#allocation6], 1
    %83 = vsyncpa [#allocation4], 1

</llo_original>
